<compile_context>
chip_gen: v6e
topology: v6e:2x2x1
jax: 0.10.0
libtpu: 0.0.40
codegen_flags: <defaults>
</compile_context>

<pallas_src>
from functools import partial

import jax
import jax.numpy as jnp
from jax import lax
from jax.experimental import pallas as pl
from jax.experimental.pallas import tpu as pltpu


def _round_up(x, m):
    return ((x + m - 1) // m) * m


def _dfl_per_element(pred, t, *, target_scale, num_bins):
    """Shared per-row DFL math (bins on sublanes).

    pred: (C, TN) float32 logits
    t:    (1, TN) float32 distance labels
    returns (1, TN) float32 per-element loss
    """
    y_label = target_scale * t                           # (1, TN)
    # torch .long() truncates toward zero; DFL labels are >= 0 so this matches.
    y_left = y_label.astype(jnp.int32)                   # (1, TN)
    y_right = jnp.minimum(y_left + 1, num_bins - 1)      # (1, TN)

    w_left = y_right.astype(jnp.float32) - y_label       # (1, TN)
    w_right = y_label - y_left.astype(jnp.float32)       # (1, TN)

    # Clamp the gather index only (weights keep original semantics).
    y_left_idx = jnp.clip(y_left, 0, num_bins - 1)

    # log-sum-exp over the bin axis (sublanes, axis 0)
    m = jnp.max(pred, axis=0, keepdims=True)                              # (1, TN)
    lse = m + jnp.log(jnp.sum(jnp.exp(pred - m), axis=0, keepdims=True))  # (1, TN)

    # Fused one-hot gather: weighted mask over bins, single sublane reduce.
    bins_idx = lax.broadcasted_iota(jnp.int32, pred.shape, 0)             # (C, TN)
    wmask = (jnp.where(bins_idx == y_left_idx, w_left, 0.0)
             + jnp.where(bins_idx == y_right, w_right, 0.0))              # (C, TN)
    gathered = jnp.sum(wmask * pred, axis=0, keepdims=True)               # (1, TN)

    # loss = w_l*(lse - p_l) + w_r*(lse - p_r) = lse*(w_l+w_r) - sum(wmask*pred)
    return lse * (w_left + w_right) - gathered


def _dfl_elementwise_kernel(target_ref, pred_ref, loss_ref, *, target_scale,
                            num_bins):
    """Per-element loss output (reduction == 'none')."""
    pred = pred_ref[...].astype(jnp.float32)             # (C, TN)
    t = target_ref[...].astype(jnp.float32)              # (1, TN)
    loss_ref[...] = _dfl_per_element(pred, t, target_scale=target_scale,
                                     num_bins=num_bins)


def _dfl_blocksum_kernel(*refs, target_scale, num_bins, n_valid, has_weight):
    """Fused weight * loss + tail-mask + block sum (reduction in mean/sum).

    Writes one 128-lane row per grid step; only lane 0 carries the partial sum.
    """
    if has_weight:
        target_ref, pred_ref, weight_ref, out_ref = refs
    else:
        target_ref, pred_ref, out_ref = refs

    pred = pred_ref[...].astype(jnp.float32)              # (C, TN)
    t = target_ref[...].astype(jnp.float32)               # (1, TN)
    loss = _dfl_per_element(pred, t, target_scale=target_scale,
                            num_bins=num_bins)            # (1, TN)
    if has_weight:
        loss = loss * weight_ref[...].astype(jnp.float32)

    # Mask out the ragged tail (garbage lanes of a partial block) BEFORE the
    # reduction; jnp.where is a select, so NaN/Inf garbage cannot leak.
    tn = loss.shape[1]
    col = lax.broadcasted_iota(jnp.int32, loss.shape, 1) + pl.program_id(0) * tn
    loss = jnp.where(col < n_valid, loss, 0.0)

    partial_sum = jnp.sum(loss)                            # scalar
    lane = lax.broadcasted_iota(jnp.int32, out_ref.shape, 1)
    out_ref[...] = jnp.where(lane == 0, partial_sum, 0.0).astype(jnp.float32)


def distribution_focal_loss_mod_pallas(pred, target, *, target_scale,
                                       bins=None, weight=None,
                                       reduction="mean", avg_factor=None,
                                       loss_weight=1.0, block_n=65536,
                                       pred_bins_first=False):
    """DFL forward matching the PyTorch module semantics.

    pred:   (N, C) logits (or (C, N) if pred_bins_first=True)
    target: (N,)   float distance labels
    """
    del bins  # unused in the reference forward path

    if pred_bins_first:
        C, N = pred.shape
        pred_t = pred
    else:
        N, C = pred.shape
        # Layout plumbing only.  TODO(synk): producing bins-first logits
        # upstream removes this extra pred read+write through HBM.
        pred_t = jnp.transpose(pred)                      # (C, N)

    target2d = target.reshape(1, N)                       # (1, N) lane-dense

    # Big lane-dense tile (multiple of 128), clamped for small N.
    # VMEM @ block_n=65536, f32 pred: pred 2MiB + target 2MiB (+weight 2MiB)
    # (+out 2MiB), each double-buffered -> <= ~12 MiB.
    block_n = min(block_n, _round_up(N, 128))
    block_n = max(128, _round_up(block_n, 128))
    grid_n = pl.cdiv(N, block_n)

    pred_bytes = jnp.dtype(pred.dtype).itemsize
    tgt_bytes = jnp.dtype(target.dtype).itemsize
    cost = pl.CostEstimate(
        flops=10 * N * C,
        transcendentals=N * (C + 1),
        bytes_accessed=N * C * pred_bytes + N * tgt_bytes + N * 4,
    )
    cparams = pltpu.CompilerParams(
        dimension_semantics=("parallel",),
        vmem_limit_bytes=32 * 1024 * 1024,
    )

    row_spec = pl.BlockSpec((1, block_n), lambda i: (0, i))
    pred_spec = pl.BlockSpec((C, block_n), lambda i: (0, i))

    if reduction in ("mean", "sum"):
        # Fused path: never materialises the N-element loss in HBM.
        has_weight = weight is not None
        inputs = [target2d, pred_t]
        in_specs = [row_spec, pred_spec]
        if has_weight:
            inputs.append(weight.reshape(1, N))
            in_specs.append(pl.BlockSpec((1, block_n), lambda i: (0, i)))

        kernel = partial(_dfl_blocksum_kernel, target_scale=float(target_scale),
                         num_bins=C, n_valid=N, has_weight=has_weight)
        partial_sums = pl.pallas_call(
            kernel,
            out_shape=jax.ShapeDtypeStruct((1, grid_n * 128), jnp.float32),
            grid_spec=pltpu.PrefetchScalarGridSpec(
                num_scalar_prefetch=0,
                grid=(grid_n,),
                in_specs=in_specs,
                out_specs=pl.BlockSpec((1, 128), lambda i: (0, i)),
            ),
            compiler_params=cparams,
            cost_estimate=cost,
        )(*inputs)

        total = jnp.sum(partial_sums)
        if avg_factor is None:
            loss = total / N if reduction == "mean" else total
        else:
            if reduction == "mean":
                loss = total / avg_factor
            else:
                raise ValueError("avg_factor can not be used with reduction='sum'")
        return loss_weight * loss

    if reduction != "none":
        raise ValueError(reduction)

    # reduction == 'none': per-element, lane-dense output.
    kernel = partial(_dfl_elementwise_kernel, target_scale=float(target_scale),
                     num_bins=C)
    per_elem = pl.pallas_call(
        kernel,
        out_shape=jax.ShapeDtypeStruct((1, N), jnp.float32),
        grid_spec=pltpu.PrefetchScalarGridSpec(
            num_scalar_prefetch=0,
            grid=(grid_n,),
            in_specs=[row_spec, pred_spec],
            out_specs=pl.BlockSpec((1, block_n), lambda i: (0, i)),
        ),
        compiler_params=cparams,
        cost_estimate=cost,
    )(target2d, pred_t)

    loss = per_elem.reshape(N)
    if weight is not None:
        loss = loss * weight
    # 'none' + avg_factor: mmdet returns the unreduced (weighted) loss as-is.
    return loss_weight * loss


class DistributionFocalLossMod:
    """JAX/Pallas port of the PyTorch DistributionFocalLossMod module."""

    def __init__(self, reduction="mean", loss_weight=1.0):
        self.reduction = reduction
        self.loss_weight = loss_weight

    def __call__(self, pred, target, target_scale=None, bins=None,
                 weight=None, avg_factor=None, reduction_override=None):
        assert reduction_override in (None, "none", "mean", "sum")
        reduction = reduction_override if reduction_override else self.reduction
        assert target_scale is not None, "target_scale must be specified"
        return distribution_focal_loss_mod_pallas(
            pred, target, target_scale=target_scale, bins=bins,
            weight=weight, reduction=reduction, avg_factor=avg_factor,
            loss_weight=self.loss_weight)


def _reference(pred, target, target_scale, reduction="mean", loss_weight=1.0):
    """Pure-JAX reference for correctness check."""
    C = pred.shape[-1]
    y_label = target_scale * target
    y_left = y_label.astype(jnp.int32)
    y_right = jnp.minimum(y_left + 1, C - 1)
    w_left = y_right.astype(jnp.float32) - y_label
    w_right = y_label - y_left.astype(jnp.float32)
    logp = jax.nn.log_softmax(pred.astype(jnp.float32), axis=-1)
    ce_l = -jnp.take_along_axis(logp, y_left[:, None], axis=-1)[:, 0]
    ce_r = -jnp.take_along_axis(logp, y_right[:, None], axis=-1)[:, 0]
    loss = ce_l * w_left + ce_r * w_right
    if reduction == "mean":
        loss = jnp.mean(loss)
    elif reduction == "sum":
        loss = jnp.sum(loss)
    return loss_weight * loss


if __name__ == "__main__":
    key = jax.random.PRNGKey(0)
    k_pred, k_tgt, k_w = jax.random.split(key, 3)

    N, C = 256, 8                       # N anchors, n+1 = 8 bins
    target_scale = 1.5
    pred = jax.random.normal(k_pred, (N, C), dtype=jnp.float32)
    target = jax.random.uniform(k_tgt, (N,), dtype=jnp.float32,
                                minval=0.0, maxval=(C - 1) / target_scale)
    weight = jax.random.uniform(k_w, (N,), dtype=jnp.float32)

    module = DistributionFocalLossMod(reduction="mean", loss_weight=1.0)

    # mean (fused block-sum path)
    out_mean = jax.block_until_ready(module(pred, target, target_scale=target_scale))
    ref_mean = _reference(pred, target, target_scale, reduction="mean")
    assert jnp.allclose(out_mean, ref_mean, rtol=1e-4, atol=1e-5), (out_mean, ref_mean)

    # sum (fused block-sum path)
    out_sum = jax.block_until_ready(
        module(pred, target, target_scale=target_scale, reduction_override="sum"))
    ref_sum = _reference(pred, target, target_scale, reduction="sum")
    assert jnp.allclose(out_sum, ref_sum, rtol=1e-4, atol=1e-5), (out_sum, ref_sum)

    # none (per-element, lane-dense output)
    out_none = jax.block_until_ready(
        module(pred, target, target_scale=target_scale, reduction_override="none"))
    ref_none = _reference(pred, target, target_scale, reduction="none")
    assert jnp.allclose(out_none, ref_none, rtol=1e-4, atol=1e-5)

    # weighted + avg_factor (weight multiply fused into the kernel)
    out_w = jax.block_until_ready(
        module(pred, target, target_scale=target_scale, weight=weight,
               avg_factor=123.0))
    ref_w = jnp.sum(_reference(pred, target, target_scale, reduction="none")
                    * weight) / 123.0
    assert jnp.allclose(out_w, ref_w, rtol=1e-4, atol=1e-5), (out_w, ref_w)

    # ragged N (not a multiple of 128): exercises in-kernel tail masking
    N2 = 200
    pred2 = jax.random.normal(k_pred, (N2, C), dtype=jnp.float32)
    target2 = jax.random.uniform(k_tgt, (N2,), dtype=jnp.float32,
                                 minval=0.0, maxval=(C - 1) / target_scale)
    out2 = jax.block_until_ready(module(pred2, target2, target_scale=target_scale))
    ref2 = _reference(pred2, target2, target_scale, reduction="mean")
    assert jnp.allclose(out2, ref2, rtol=1e-4, atol=1e-5), (out2, ref2)

    print("KERNEL_OK")
</pallas_src>

<mosaic_0001>
module attributes {stable_mosaic.version = 11 : i64} {
  func.func @_dfl_blocksum_kernel(%arg0: i32, %arg1: memref<1x256xf32, #tpu.memory_space<vmem>>, %arg2: memref<8x256xf32, #tpu.memory_space<vmem>>, %arg3: memref<1x128xf32, #tpu.memory_space<vmem>>) attributes {dimension_semantics = [#tpu.dimension_semantics<parallel>], iteration_bounds = array<i64: 1>, scalar_prefetch = 0 : i64, scratch_operands = 0 : i64, tpu.core_type = #tpu.core_type<tc>, window_params = [{transform_indices = @transform_0, window_bounds = array<i64: 1, 256>}, {transform_indices = @transform_1, window_bounds = array<i64: 8, 256>}, {transform_indices = @transform_2, window_bounds = array<i64: 1, 128>}]} {
    %c0 = arith.constant 0 : index
    %c0_0 = arith.constant 0 : index
    %0 = vector.load %arg2[%c0, %c0_0] : memref<8x256xf32, #tpu.memory_space<vmem>>, vector<8x256xf32>
    %c0_1 = arith.constant 0 : index
    %c0_2 = arith.constant 0 : index
    %1 = vector.load %arg1[%c0_1, %c0_2] : memref<1x256xf32, #tpu.memory_space<vmem>>, vector<1x256xf32>
    %cst = arith.constant 1.500000e+00 : f32
    %2 = vector.broadcast %cst : f32 to vector<1x256xf32>
    %3 = arith.mulf %2, %1 : vector<1x256xf32>
    %4 = arith.fptosi %3 : vector<1x256xf32> to vector<1x256xi32>
    %c1_i32 = arith.constant 1 : i32
    %5 = vector.broadcast %c1_i32 : i32 to vector<1x256xi32>
    %6 = arith.addi %4, %5 : vector<1x256xi32>
    %c7_i32 = arith.constant 7 : i32
    %7 = vector.broadcast %c7_i32 : i32 to vector<1x256xi32>
    %8 = arith.minsi %6, %7 : vector<1x256xi32>
    %9 = arith.sitofp %8 : vector<1x256xi32> to vector<1x256xf32>
    %10 = arith.subf %9, %3 : vector<1x256xf32>
    %11 = arith.sitofp %4 : vector<1x256xi32> to vector<1x256xf32>
    %12 = arith.subf %3, %11 : vector<1x256xf32>
    %c0_i32 = arith.constant 0 : i32
    %c7_i32_3 = arith.constant 7 : i32
    %13 = vector.broadcast %c0_i32 : i32 to vector<1x256xi32>
    %14 = arith.maxsi %13, %4 : vector<1x256xi32>
    %15 = vector.broadcast %c7_i32_3 : i32 to vector<1x256xi32>
    %16 = arith.minsi %15, %14 : vector<1x256xi32>
    %cst_4 = arith.constant dense<0xFF800000> : vector<256xf32>
    %17 = vector.multi_reduction <maximumf>, %0, %cst_4 [0] : vector<8x256xf32> to vector<256xf32>
    %18 = vector.shape_cast %17 : vector<256xf32> to vector<1x256xf32>
    %19 = vector.broadcast %18 : vector<1x256xf32> to vector<8x256xf32>
    %20 = arith.subf %0, %19 : vector<8x256xf32>
    %21 = math.exp %20 : vector<8x256xf32>
    %cst_5 = arith.constant dense<0.000000e+00> : vector<256xf32>
    %22 = vector.multi_reduction <add>, %21, %cst_5 [0] : vector<8x256xf32> to vector<256xf32>
    %23 = vector.shape_cast %22 : vector<256xf32> to vector<1x256xf32>
    %24 = math.log %23 : vector<1x256xf32>
    %25 = arith.addf %18, %24 : vector<1x256xf32>
    %26 = tpu.iota {dimensions = array<i32: 0>} : vector<8x256xi32>
    %27 = vector.broadcast %16 : vector<1x256xi32> to vector<8x256xi32>
    %28 = arith.cmpi eq, %26, %27 : vector<8x256xi32>
    %cst_6 = arith.constant 0.000000e+00 : f32
    %29 = vector.shape_cast %10 : vector<1x256xf32> to vector<1x256xf32>
    %30 = vector.broadcast %29 : vector<1x256xf32> to vector<8x256xf32>
    %31 = vector.broadcast %cst_6 : f32 to vector<8x256xf32>
    %32 = arith.select %28, %30, %31 : vector<8x256xi1>, vector<8x256xf32>
    %33 = vector.broadcast %8 : vector<1x256xi32> to vector<8x256xi32>
    %34 = arith.cmpi eq, %26, %33 : vector<8x256xi32>
    %cst_7 = arith.constant 0.000000e+00 : f32
    %35 = vector.shape_cast %12 : vector<1x256xf32> to vector<1x256xf32>
    %36 = vector.broadcast %35 : vector<1x256xf32> to vector<8x256xf32>
    %37 = vector.broadcast %cst_7 : f32 to vector<8x256xf32>
    %38 = arith.select %34, %36, %37 : vector<8x256xi1>, vector<8x256xf32>
    %39 = arith.addf %32, %38 : vector<8x256xf32>
    %40 = arith.mulf %39, %0 : vector<8x256xf32>
    %cst_8 = arith.constant dense<0.000000e+00> : vector<256xf32>
    %41 = vector.multi_reduction <add>, %40, %cst_8 [0] : vector<8x256xf32> to vector<256xf32>
    %42 = vector.shape_cast %41 : vector<256xf32> to vector<1x256xf32>
    %43 = arith.addf %10, %12 : vector<1x256xf32>
    %44 = arith.mulf %25, %43 : vector<1x256xf32>
    %45 = arith.subf %44, %42 : vector<1x256xf32>
    %46 = tpu.iota {dimensions = array<i32: 1>} : vector<1x256xi32>
    %c256_i32 = arith.constant 256 : i32
    %47 = arith.muli %arg0, %c256_i32 : i32
    %48 = vector.broadcast %47 : i32 to vector<1x256xi32>
    %49 = arith.addi %46, %48 : vector<1x256xi32>
    %c256_i32_9 = arith.constant 256 : i32
    %50 = vector.broadcast %c256_i32_9 : i32 to vector<1x256xi32>
    %51 = arith.cmpi slt, %49, %50 : vector<1x256xi32>
    %cst_10 = arith.constant 0.000000e+00 : f32
    %52 = vector.broadcast %cst_10 : f32 to vector<1x256xf32>
    %53 = arith.select %51, %45, %52 : vector<1x256xi1>, vector<1x256xf32>
    %54 = vector.shape_cast %53 : vector<1x256xf32> to vector<1x1x256xf32>
    %cst_11 = arith.constant dense<0.000000e+00> : vector<1xf32>
    %55 = vector.multi_reduction <add>, %54, %cst_11 [1, 2] : vector<1x1x256xf32> to vector<1xf32>
    %56 = vector.shape_cast %55 : vector<1xf32> to vector<1x1x1xf32>
    %57 = vector.extract %56[0, 0, 0] : f32 from vector<1x1x1xf32>
    %58 = tpu.iota {dimensions = array<i32: 1>} : vector<1x128xi32>
    %c0_i32_12 = arith.constant 0 : i32
    %59 = vector.broadcast %c0_i32_12 : i32 to vector<1x128xi32>
    %60 = arith.cmpi eq, %58, %59 : vector<1x128xi32>
    %cst_13 = arith.constant 0.000000e+00 : f32
    %61 = vector.broadcast %57 : f32 to vector<1x128xf32>
    %62 = vector.broadcast %cst_13 : f32 to vector<1x128xf32>
    %63 = arith.select %60, %61, %62 : vector<1x128xi1>, vector<1x128xf32>
    %c0_14 = arith.constant 0 : index
    %c0_15 = arith.constant 0 : index
    %64 = vector.load %arg3[%c0_14, %c0_15] : memref<1x128xf32, #tpu.memory_space<vmem>>, vector<1x128xf32>
    tpu.vector_store %arg3[%c0_14, %c0_15], %63 {strides = array<i32>} : memref<1x128xf32, #tpu.memory_space<vmem>>, vector<1x128xf32>,
    return
  }
  func.func @transform_0(%arg0: i32) -> (i32, i32) {
    %c0_i32 = arith.constant 0 : i32
    %c0_i32_0 = arith.constant 0 : i32
    return %c0_i32, %arg0 : i32, i32
  }
  func.func @transform_1(%arg0: i32) -> (i32, i32) {
    %c0_i32 = arith.constant 0 : i32
    %c0_i32_0 = arith.constant 0 : i32
    return %c0_i32, %arg0 : i32, i32
  }
  func.func @transform_2(%arg0: i32) -> (i32, i32) {
    %c0_i32 = arith.constant 0 : i32
    %c0_i32_0 = arith.constant 0 : i32
    return %c0_i32, %arg0 : i32, i32
  }
}

</mosaic_0001>

<llo_original>
// kernel: tpu_custom_call.1
$region0: #{tpu_custom_call.1}
  #allocation0 [shape = 'u32[]', space=smem, size = 0x4, offset = 0x4, fixed_abs, tag = 'smem constant byte address 0x4 - core index']
  #allocation1 [shape = 'u32[144,128]{1,0:T(1,128)}', space=vmem, size = 0x12000, scoped, tag = 'internal scratch']
  %s0 = inlined_call_operand.hbm [shape: f32[1,256], index: 0, kind: input, shape index: {}]
  %s1 = inlined_call_operand.hbm [shape: f32[8,256], index: 1, kind: input, shape index: {}]
  %s2 = inlined_call_operand.hbm [shape: f32[1,128], index: 2, kind: output, shape index: {}]
  %s3 = sld [smem:[#allocation0]]
  $region26: #{tpu_custom_call.1} parent=0
    _
  %s5 = ssub.s32 1, %s3
  %s6 = scalar_select 0, %s5, %s3
  $region1: #{tpu_custom_call.1} parent=0
    #allocation2 [shape = 'u8[1024]{0}', space=vmem, size = 0x400, scoped, tag = 'input window, operand 0, single buffered']
    #allocation3 [shape = 's32[1]{0}', space=sflag, size = 0x4, scoped, tag = 'scoped memory for tpu_custom_call.1']
    #allocation4 [shape = 's32[1]{0}', space=sflag, size = 0x4, scoped, tag = 'scoped memory for tpu_custom_call.1']
    #allocation5 [shape = 'u8[8192]{0}', space=vmem, size = 0x2000, scoped, tag = 'input window, operand 1, single buffered']
    #allocation6 [shape = 's32[1]{0}', space=sflag, size = 0x4, scoped, tag = 'scoped memory for tpu_custom_call.1']
    #allocation7 [shape = 'u8[512]{0}', space=vmem, size = 0x400, scoped, tag = 'output window, operand 0, single buffered']
    %7 = vsyncpa [#allocation3], 0
    %8 = vsyncpa [#allocation6], 0
    %9 = vsyncpa [#allocation4], 0
    // Predicated region
    $region2: #{tpu_custom_call.1} parent=1 // pred_check
      _
    $region3: #{tpu_custom_call.1} parent=1 // pred_check_branch
      %11 = sbr.rel (0) target = $region5
    $region4: #{tpu_custom_call.1} parent=1 // pred_region
      %s13 = ssub.s32 32, 32
      %14 = vsyncadd [#allocation3], %s13
      %s16 = sshll.u32 [#allocation2], 4
      %s17 = int_to_ptr.vmem [resolvable:$true] %s16
      %19 = dma.hbm_to_vmem [thread:$0]  %s0, 32, %s17, [#allocation3]
    $region5: #{tpu_custom_call.1} parent=1 // pred_fallthru
      _
    // Predicated region
    $region6: #{tpu_custom_call.1} parent=1 // pred_check
      _
    $region7: #{tpu_custom_call.1} parent=1 // pred_check_branch
      %21 = sbr.rel (0) target = $region9
    $region8: #{tpu_custom_call.1} parent=1 // pred_region
      %s23 = ssub.s32 256, 256
      %24 = vsyncadd [#allocation6], %s23
      %s26 = sshll.u32 [#allocation5], 4
      %s27 = int_to_ptr.vmem [resolvable:$true] %s26
      %29 = dma.hbm_to_vmem [thread:$0]  %s1, 256, %s27, [#allocation6]
    $region9: #{tpu_custom_call.1} parent=1 // pred_fallthru
      _
    // Predicated region
    $region10: #{tpu_custom_call.1} parent=1 // pred_check
      _
    $region11: #{tpu_custom_call.1} parent=1 // pred_check_branch
      %31 = sbr.rel (0) target = $region13
    $region12: #{tpu_custom_call.1} parent=1 // pred_region
      %32 = dma.done [#allocation3], 32
    $region13: #{tpu_custom_call.1} parent=1 // pred_fallthru
      _
    // Predicated region
    $region14: #{tpu_custom_call.1} parent=1 // pred_check
      _
    $region15: #{tpu_custom_call.1} parent=1 // pred_check_branch
      %34 = sbr.rel (0) target = $region17
    $region16: #{tpu_custom_call.1} parent=1 // pred_region
      %35 = dma.done [#allocation6], 256
    $region17: #{tpu_custom_call.1} parent=1 // pred_fallthru
      _
    %v36 = vld [vmem:[#allocation5] sm:$0xff]
    %v37 = vld [vmem:[#allocation5 + $0x8] sm:$0xff]
    %v38 = vld [vmem:[#allocation2] sm:$0x3]
    %v39 = vmul.f32 %v38, 1.5
    %v40 = vcvt.f32.s32.to.zero.pseudo %v39
    %v41 = vadd.s32 %v40, 1
    %vm42 = vcmp.lt.s32.totalorder %v41, 7
    %v43 = vsel %vm42, %v41, 7
    %v44 = vcvt.s32.f32 %v43
    %v45 = vsub.f32 %v44, %v39
    %v46 = vcvt.s32.f32 %v40
    %v47 = vsub.f32 %v39, %v46
    %vm48 = vcmp.gt.s32.totalorder %v40, 0
    %v49 = vsel %vm48, %v40, 0
    %vm50 = vcmp.lt.s32.totalorder %v49, 7
    %v51 = vsel %vm50, %v49, 7
    %v52 = vrot.slane %v36, 4
    %v53 = vmax.f32 %v36, %v52
    %v54 = vrot.slane %v53, 2
    %v55 = vmax.f32 %v53, %v54
    %v56 = vrot.slane %v55, 1
    %v57 = vmax.f32 %v55, %v56
    %v58 = vrot.slane %v37, 4
    %v59 = vmax.f32 %v37, %v58
    %v60 = vrot.slane %v59, 2
    %v61 = vmax.f32 %v59, %v60
    %v62 = vrot.slane %v61, 1
    %v63 = vmax.f32 %v61, %v62
    %v64 = vsub.f32 %v36, %v57
    %v65 = vsub.f32 %v37, %v63
    %v66 = vmul.f32 %v64, 1.442695
    %v67 = vpow.pop %v66
    %v68 = vmul.f32 %v65, 1.442695
    %v69 = vpow.pop %v68
    %v70 = vrot.slane %v67, 4
    %v71 = vadd.f32 %v67, %v70
    %v72 = vrot.slane %v71, 2
    %v73 = vadd.f32 %v71, %v72
    %v74 = vrot.slane %v73, 1
    %v75 = vadd.f32 %v73, %v74
    %v76 = vrot.slane %v69, 4
    %v77 = vadd.f32 %v69, %v76
    %v78 = vrot.slane %v77, 2
    %v79 = vadd.f32 %v77, %v78
    %v80 = vrot.slane %v79, 1
    %v81 = vadd.f32 %v79, %v80
    %v82 = vlog2.pop %v75
    %v83 = vmul.f32 %v82, 0.6931472
    %v84 = vlog2.pop %v81
    %v85 = vmul.f32 %v84, 0.6931472
    %v86 = vadd.f32 %v57, %v83
    %v87 = vadd.f32 %v63, %v85
    %v88 = vlaneseq
    %v89 = vshrl.u32 %v88, 7
    %v90 = vlaneseq
    %v91 = vshrl.u32 %v90, 7
    %v92 = vsub.s32 0, %v91
    %v93 = vrot.slane %v51, %v92
    %v94 = vlaneseq
    %v95 = vshrl.u32 %v94, 7
    %v96 = vsub.s32 1, %v95
    %v97 = vrot.slane %v51, %v96
    %vm98 = vcmp.eq.s32.totalorder %v89, %v93
    %vm99 = vcmp.eq.s32.totalorder %v89, %v97
    %v101 = vlaneseq
    %v102 = vshrl.u32 %v101, 7
    %v103 = vsub.s32 0, %v102
    %v104 = vrot.slane %v45, %v103
    %v105 = vlaneseq
    %v106 = vshrl.u32 %v105, 7
    %v107 = vsub.s32 1, %v106
    %v108 = vrot.slane %v45, %v107
    %v111 = vsel %vm98, %v104, 0.0
    %v112 = vsel %vm99, %v108, 0.0
    %v113 = vlaneseq
    %v114 = vshrl.u32 %v113, 7
    %v115 = vsub.s32 0, %v114
    %v116 = vrot.slane %v43, %v115
    %v117 = vlaneseq
    %v118 = vshrl.u32 %v117, 7
    %v119 = vsub.s32 1, %v118
    %v120 = vrot.slane %v43, %v119
    %vm121 = vcmp.eq.s32.totalorder %v89, %v116
    %vm122 = vcmp.eq.s32.totalorder %v89, %v120
    %v124 = vlaneseq
    %v125 = vshrl.u32 %v124, 7
    %v126 = vsub.s32 0, %v125
    %v127 = vrot.slane %v47, %v126
    %v128 = vlaneseq
    %v129 = vshrl.u32 %v128, 7
    %v130 = vsub.s32 1, %v129
    %v131 = vrot.slane %v47, %v130
    %v134 = vsel %vm121, %v127, 0.0
    %v135 = vsel %vm122, %v131, 0.0
    %v136 = vadd.f32 %v111, %v134
    %v137 = vadd.f32 %v112, %v135
    %v138 = vmul.f32 %v136, %v36
    %v139 = vmul.f32 %v137, %v37
    %v140 = vrot.slane %v138, 4
    %v141 = vadd.f32 %v138, %v140
    %v142 = vrot.slane %v141, 2
    %v143 = vadd.f32 %v141, %v142
    %v144 = vrot.slane %v143, 1
    %v145 = vadd.f32 %v143, %v144
    %v146 = vrot.slane %v139, 4
    %v147 = vadd.f32 %v139, %v146
    %v148 = vrot.slane %v147, 2
    %v149 = vadd.f32 %v147, %v148
    %v150 = vrot.slane %v149, 1
    %v151 = vadd.f32 %v149, %v150
    %v152 = vadd.f32 %v45, %v47
    %v154 = vlaneseq
    %v155 = vshrl.u32 %v154, 7
    %v156 = vsub.s32 0, %v155
    %v157 = vrot.slane %v152, %v156
    %v158 = vlaneseq
    %v159 = vshrl.u32 %v158, 7
    %v160 = vsub.s32 1, %v159
    %v161 = vrot.slane %v152, %v160
    %v164 = vmul.f32 %v86, %v157
    %v165 = vmul.f32 %v87, %v161
    %v166 = vsub.f32 %v164, %v145
    %v167 = vsub.f32 %v165, %v151
    %v168 = vlaneseq
    %v169 = vand.u32 %v168, 127
    %v170 = vadd.s32 %v169, 128
    %s171 = smul.u32 0, 256
    %v172 = vstv %s171
    %v173 = vadd.s32 %v169, %v172
    %v174 = vadd.s32 %v170, %v172
    %vm175 = vcmp.lt.s32.totalorder %v173, 256
    %vm176 = vcmp.lt.s32.totalorder %v174, 256
    %v177 = vsel %vm175, %v166, 0.0
    %v178 = vsel %vm176, %v167, 0.0
    %vm179 = vcmask 1040384
    %v180 = vsel %vm179, %v177, 0.0
    %v181 = vsel %vm179, %v178, 0.0
    %v182 = vadd.f32 %v180, %v181
    %183 = vadd.xlane.f32.xlu0 %v182
    %v184 = vpop.xlane.xlu0 %183
    %v185 = vrot.slane %v184, 4
    %v186 = vadd.f32 %v184, %v185
    %v187 = vrot.slane %v186, 2
    %v188 = vadd.f32 %v186, %v187
    %v189 = vrot.slane %v188, 1
    %v190 = vadd.f32 %v188, %v189
    %s191 = vtos %v190
    %vm192 = vcmp.eq.s32.totalorder %v169, 0
    %v193 = vstv %s191
    %v194 = vsel %vm192, %v193, 0.0
    %195 = vst [vmem:[#allocation7] sm:$0x1] %v194
    // Predicated region
    $region18: #{tpu_custom_call.1} parent=1 // pred_check
      _
    $region19: #{tpu_custom_call.1} parent=1 // pred_check_branch
      %197 = sbr.rel (0) target = $region21
    $region20: #{tpu_custom_call.1} parent=1 // pred_region
      %s199 = ssub.s32 16, 16
      %200 = vsyncadd [#allocation4], %s199
      %s202 = sshll.u32 [#allocation7], 4
      %s203 = int_to_ptr.vmem [resolvable:$true] %s202
      %205 = dma.vmem_to_hbm [thread:$0]  %s203, 16, %s2, [#allocation4]
    $region21: #{tpu_custom_call.1} parent=1 // pred_fallthru
      _
    // Predicated region
    $region22: #{tpu_custom_call.1} parent=1 // pred_check
      _
    $region23: #{tpu_custom_call.1} parent=1 // pred_check_branch
      %207 = sbr.rel (0) target = $region25
    $region24: #{tpu_custom_call.1} parent=1 // pred_region
      %208 = dma.done [#allocation4], 16
    $region25: #{tpu_custom_call.1} parent=1 // pred_fallthru
      _
    %209 = vsyncpa [#allocation3], 1
    %210 = vsyncpa [#allocation6], 1
    %211 = vsyncpa [#allocation4], 1

</llo_original>
